<compile_context>
chip_gen: v5e
topology: v5e:2x2
jax: 0.10.0
libtpu: 0.0.40
codegen_flags: <defaults>
</compile_context>

<pallas_src>
import functools

import numpy as np
import jax
import jax.numpy as jnp
from jax import lax
from jax.experimental import pallas as pl
from jax.experimental.pallas import tpu as pltpu


def _round_up(x, m):
    return ((x + m - 1) // m) * m


# ----------------------------------------------------------------------------
# Pallas kernels
# ----------------------------------------------------------------------------
def _gemm_bias_kernel(w_ref, x_ref, b_ref, o_ref, *, apply_relu):
    """One column-tile of o = relu?(w @ x + b).

    w:(Cout,K) bf16, x:(K,tn) bf16, b:(Cout,1) f32 -> o:(Cout,tn) f32 (lane-dense).
    """
    acc = jnp.dot(w_ref[...], x_ref[...], preferred_element_type=jnp.float32)
    acc = acc + b_ref[...]
    if apply_relu:
        acc = jnp.maximum(acc, 0.0)
    o_ref[...] = acc.astype(o_ref.dtype)


def _maxpool4_kernel(x_ref, o_ref):
    """x:(4, tl) stacked 2x2 window corners -> o:(1, tl) elementwise max."""
    x = x_ref[...]
    a = jnp.maximum(x[0:1, :], x[1:2, :])
    b = jnp.maximum(x[2:3, :], x[3:4, :])
    o_ref[...] = jnp.maximum(a, b)


# ----------------------------------------------------------------------------
# Pallas wrappers
# ----------------------------------------------------------------------------
def pallas_gemm_t(w_mat, x_t, b, *, apply_relu, tn=512):
    """relu?(w_mat @ x_t + b[:, None]) tiled over columns (lane-dense output).

    w_mat: (Cout, K) f32, x_t: (K, M) f32, b: (Cout,) f32 -> (Cout, M) f32.
    Operands are cast to bf16, accumulation is f32 (native MXU path).
    """
    cout, k = w_mat.shape
    k2, m = x_t.shape
    assert k == k2

    # Right-size the column tile: no huge padding for tiny M (e.g. FC layers, M=batch).
    if m > tn:
        m_pad = _round_up(m, tn)
    else:
        tn = _round_up(m, 128)
        m_pad = tn
    if m_pad != m:
        x_t = jnp.pad(x_t, ((0, 0), (0, m_pad - m)))

    w_bf = w_mat.astype(jnp.bfloat16)
    x_bf = x_t.astype(jnp.bfloat16)
    b2 = b.reshape(cout, 1).astype(jnp.float32)

    out = pl.pallas_call(
        functools.partial(_gemm_bias_kernel, apply_relu=apply_relu),
        out_shape=jax.ShapeDtypeStruct((cout, m_pad), jnp.float32),
        grid=(m_pad // tn,),
        in_specs=[
            pl.BlockSpec((cout, k), lambda i: (0, 0)),   # weights resident
            pl.BlockSpec((k, tn), lambda i: (0, i)),     # column tile of patches^T
            pl.BlockSpec((cout, 1), lambda i: (0, 0)),   # bias
        ],
        out_specs=pl.BlockSpec((cout, tn), lambda i: (0, i)),
        compiler_params=pltpu.CompilerParams(
            dimension_semantics=("parallel",),
        ),
    )(w_bf, x_bf, b2)
    return out[:, :m]


def conv3x3_relu(x_chwn, w_oihw, b, *, padding):
    """3x3 conv (stride 1) + ReLU via im2col (glue) + transposed Pallas GEMM.

    x_chwn: (Cin, H, W, N); w_oihw: (Cout, Cin, 3, 3) torch layout.
    Returns (Cout, Ho, Wo, N).
    """
    # TODO(synk): fuse im2col into the kernel (9 shifted K=Cin matmuls accumulated
    # in a VMEM scratch) to avoid materializing the 9x-expanded patches in HBM.
    cout, cin, k, _ = w_oihw.shape
    if padding:
        x_chwn = jnp.pad(
            x_chwn, ((0, 0), (padding, padding), (padding, padding), (0, 0))
        )
    c, h, w, n = x_chwn.shape
    ho, wo = h - k + 1, w - k + 1

    cols = []
    for dy in range(k):
        for dx in range(k):
            cols.append(x_chwn[:, dy : dy + ho, dx : dx + wo, :])
    # (C, 9, Ho, Wo, N) -> (C*9, M); row order (cin, dy, dx) matches
    # w.reshape(Cout, Cin*9) column order exactly.
    patches_t = jnp.stack(cols, axis=1).reshape(c * k * k, ho * wo * n)
    w_mat = w_oihw.reshape(cout, cin * k * k)

    y = pallas_gemm_t(w_mat, patches_t, b, apply_relu=True)
    return y.reshape(cout, ho, wo, n)


def maxpool2x2(x_chwn, *, tl=512):
    """MaxPool2d(kernel=2, stride=2), floor mode, on (C, H, W, N) activations."""
    c, h, w, n = x_chwn.shape
    ho, wo = h // 2, w // 2
    x = x_chwn[:, : 2 * ho, : 2 * wo, :]
    corners = jnp.stack(
        [
            x[:, 0::2, 0::2, :],
            x[:, 0::2, 1::2, :],
            x[:, 1::2, 0::2, :],
            x[:, 1::2, 1::2, :],
        ],
        axis=0,
    ).reshape(4, -1)                              # (4, F), F = C*Ho*Wo*N
    f = corners.shape[1]

    if f > tl:
        f_pad = _round_up(f, tl)
    else:
        tl = _round_up(f, 128)
        f_pad = tl
    if f_pad != f:
        corners = jnp.pad(corners, ((0, 0), (0, f_pad - f)))

    out = pl.pallas_call(
        _maxpool4_kernel,
        out_shape=jax.ShapeDtypeStruct((1, f_pad), x_chwn.dtype),
        grid=(f_pad // tl,),
        in_specs=[pl.BlockSpec((4, tl), lambda i: (0, i))],
        out_specs=pl.BlockSpec((1, tl), lambda i: (0, i)),
        compiler_params=pltpu.CompilerParams(
            dimension_semantics=("parallel",),
        ),
    )(corners)
    return out[0, :f].reshape(c, ho, wo, n)


# ----------------------------------------------------------------------------
# HW4Net forward (Pallas) + parameter init
# ----------------------------------------------------------------------------
def hw4net_forward(x_nchw, params, task):
    # NCHW (torch) -> channel-major CHWN for the whole network. The transposed
    # GEMM keeps channels on the sublane axis and batch*spatial on the lane axis,
    # so the flatten feeding fc1 is a pure reshape (matches torch's .view order).
    pad = 1 if task == "task2" else 0
    x = jnp.transpose(x_nchw, (1, 2, 3, 0))          # (C, H, W, N)

    x = conv3x3_relu(x, params["conv1_w"], params["conv1_b"], padding=pad)
    x = maxpool2x2(x)
    x = conv3x3_relu(x, params["conv2_w"], params["conv2_b"], padding=pad)
    x = maxpool2x2(x)
    if task == "task3":
        # TODO(synk): fuse the 10 identical conv3 layers into ONE pallas_call with
        # the (32,14,14,N) activation and 9x32x32 weight resident in VMEM.
        for _ in range(10):
            x = conv3x3_relu(x, params["conv3_w"], params["conv3_b"], padding=1)

    c, h, w, n = x.shape
    x_t = x.reshape(c * h * w, n)                    # (C*H*W, N) == torch .view order, transposed
    h1 = pallas_gemm_t(params["fc1_w"], x_t, params["fc1_b"], apply_relu=True)   # (64, N)
    out = pallas_gemm_t(params["fc2_w"], h1, params["fc2_b"], apply_relu=False)  # (5, N)
    return out.T                                     # (N, 5)


def _uniform(key, shape, bound):
    return jax.random.uniform(key, shape, jnp.float32, -bound, bound)


def init_params(key, task):
    ks = jax.random.split(key, 10)

    def conv_init(kw, kb, cout, cin, k):
        bound = 1.0 / np.sqrt(cin * k * k)
        return _uniform(kw, (cout, cin, k, k), bound), _uniform(kb, (cout,), bound)

    def fc_init(kw, kb, out_f, in_f):
        bound = 1.0 / np.sqrt(in_f)
        return _uniform(kw, (out_f, in_f), bound), _uniform(kb, (out_f,), bound)

    p = {}
    p["conv1_w"], p["conv1_b"] = conv_init(ks[0], ks[1], 16, 3, 3)
    p["conv2_w"], p["conv2_b"] = conv_init(ks[2], ks[3], 32, 16, 3)
    if task == "task3":
        p["conv3_w"], p["conv3_b"] = conv_init(ks[4], ks[5], 32, 32, 3)
    fc1_in = 32 * 16 * 16 if task == "task2" else 32 * 14 * 14
    p["fc1_w"], p["fc1_b"] = fc_init(ks[6], ks[7], 64, fc1_in)
    p["fc2_w"], p["fc2_b"] = fc_init(ks[8], ks[9], 5, 64)
    return p


# ----------------------------------------------------------------------------
# Pure-JAX f32 reference (mirrors the PyTorch forward) for a correctness check
# ----------------------------------------------------------------------------
def reference_forward(x_nchw, params, task):
    pad = 1 if task == "task2" else 0
    hp = lax.Precision.HIGHEST

    def conv_ref(x, w, b, padding):
        y = lax.conv_general_dilated(
            x, w, window_strides=(1, 1),
            padding=[(padding, padding), (padding, padding)],
            dimension_numbers=("NCHW", "OIHW", "NCHW"),
            precision=hp,
        )
        return jax.nn.relu(y + b[None, :, None, None])

    def pool_ref(x):
        return lax.reduce_window(
            x, -jnp.inf, lax.max, (1, 1, 2, 2), (1, 1, 2, 2), "VALID"
        )

    x = pool_ref(conv_ref(x_nchw, params["conv1_w"], params["conv1_b"], pad))
    x = pool_ref(conv_ref(x, params["conv2_w"], params["conv2_b"], pad))
    if task == "task3":
        for _ in range(10):
            x = conv_ref(x, params["conv3_w"], params["conv3_b"], 1)
    x = x.reshape(x.shape[0], -1)
    x = jax.nn.relu(jnp.dot(x, params["fc1_w"].T, precision=hp) + params["fc1_b"])
    return jnp.dot(x, params["fc2_w"].T, precision=hp) + params["fc2_b"]


# ----------------------------------------------------------------------------
if __name__ == "__main__":
    task = "task1"
    key = jax.random.PRNGKey(0)
    kx, kp = jax.random.split(key)

    # Input matching the module: 3-channel 64x64 images (gives 32*14*14 -> fc1).
    x = jax.random.normal(kx, (2, 3, 64, 64), jnp.float32)  # NCHW
    params = init_params(kp, task)

    out = hw4net_forward(x, params, task)
    out = jax.block_until_ready(out)
    assert out.shape == (2, 5)

    ref = jax.block_until_ready(reference_forward(x, params, task))
    # Kernel path uses bf16 MXU operands with f32 accumulation; the f32
    # "highest"-precision reference therefore differs at the ~1e-3 level, so the
    # tolerance is relaxed accordingly.
    np.testing.assert_allclose(np.asarray(out), np.asarray(ref), rtol=2e-2, atol=2e-2)

    print("KERNEL_OK")
</pallas_src>

<mosaic_0001>
module attributes {stable_mosaic.version = 11 : i64} {
  func.func @_gemm_bias_kernel(%arg0: i32, %arg1: memref<16x27xbf16, #tpu.memory_space<vmem>>, %arg2: memref<27x512xbf16, #tpu.memory_space<vmem>>, %arg3: memref<16x1xf32, #tpu.memory_space<vmem>>, %arg4: memref<16x512xf32, #tpu.memory_space<vmem>>) attributes {dimension_semantics = [#tpu.dimension_semantics<parallel>], iteration_bounds = array<i64: 16>, scalar_prefetch = 0 : i64, scratch_operands = 0 : i64, tpu.core_type = #tpu.core_type<tc>, window_params = [{pipeline_mode = #tpu.pipeline_mode<synchronous>, transform_indices = @transform_0, window_bounds = array<i64: 16, 27>}, {transform_indices = @transform_1, window_bounds = array<i64: 27, 512>}, {pipeline_mode = #tpu.pipeline_mode<synchronous>, transform_indices = @transform_2, window_bounds = array<i64: 16, 1>}, {transform_indices = @transform_3, window_bounds = array<i64: 16, 512>}]} {
    %c0 = arith.constant 0 : index
    %c0_0 = arith.constant 0 : index
    %0 = vector.load %arg1[%c0, %c0_0] : memref<16x27xbf16, #tpu.memory_space<vmem>>, vector<16x27xbf16>
    %c0_1 = arith.constant 0 : index
    %c0_2 = arith.constant 0 : index
    %1 = vector.load %arg2[%c0_1, %c0_2] : memref<27x512xbf16, #tpu.memory_space<vmem>>, vector<27x512xbf16>
    %cst = arith.constant dense<0.000000e+00> : vector<16x512xf32>
    %2 = tpu.matmul %0, %1, %cst {dimension_numbers = #tpu.dot_dimension_numbers<[1], [0], [0], [1], [0, 0, 1, 1], [], []>} : vector<16x27xbf16>, vector<27x512xbf16>, vector<16x512xf32> -> vector<16x512xf32>
    %c0_3 = arith.constant 0 : index
    %c0_4 = arith.constant 0 : index
    %3 = vector.load %arg3[%c0_3, %c0_4] : memref<16x1xf32, #tpu.memory_space<vmem>>, vector<16x1xf32>
    %4 = vector.broadcast %3 : vector<16x1xf32> to vector<16x512xf32>
    %5 = arith.addf %2, %4 : vector<16x512xf32>
    %cst_5 = arith.constant 0.000000e+00 : f32
    %6 = vector.broadcast %cst_5 : f32 to vector<16x512xf32>
    %7 = arith.maximumf %5, %6 : vector<16x512xf32>
    %c0_6 = arith.constant 0 : index
    %c0_7 = arith.constant 0 : index
    %8 = vector.load %arg4[%c0_6, %c0_7] : memref<16x512xf32, #tpu.memory_space<vmem>>, vector<16x512xf32>
    tpu.vector_store %arg4[%c0_6, %c0_7], %7 {strides = array<i32>} : memref<16x512xf32, #tpu.memory_space<vmem>>, vector<16x512xf32>,
    return
  }
  func.func @transform_0(%arg0: i32) -> (i32, i32) {
    %c0_i32 = arith.constant 0 : i32
    %c0_i32_0 = arith.constant 0 : i32
    %c0_i32_1 = arith.constant 0 : i32
    return %c0_i32, %c0_i32_0 : i32, i32
  }
  func.func @transform_1(%arg0: i32) -> (i32, i32) {
    %c0_i32 = arith.constant 0 : i32
    %c0_i32_0 = arith.constant 0 : i32
    return %c0_i32, %arg0 : i32, i32
  }
  func.func @transform_2(%arg0: i32) -> (i32, i32) {
    %c0_i32 = arith.constant 0 : i32
    %c0_i32_0 = arith.constant 0 : i32
    %c0_i32_1 = arith.constant 0 : i32
    return %c0_i32, %c0_i32_0 : i32, i32
  }
  func.func @transform_3(%arg0: i32) -> (i32, i32) {
    %c0_i32 = arith.constant 0 : i32
    %c0_i32_0 = arith.constant 0 : i32
    return %c0_i32, %arg0 : i32, i32
  }
}

</mosaic_0001>

<llo_original>
// kernel: tpu_custom_call.1
$region0: #{tpu_custom_call.1}
  #allocation0 [shape = 'u32[]', space=smem, size = 0x4, offset = 0x4, fixed_abs, tag = 'smem constant byte address 0x4 - core index']
  #allocation1 [shape = 'u32[72,128]{1,0:T(1,128)}', space=vmem, size = 0x9000, scoped, tag = 'internal scratch']
  %s0 = inlined_call_operand.vmem [shape: bf16[16,27], index: 0, kind: input, shape index: {}]
  %s1 = inlined_call_operand.hbm [shape: bf16[27,8192], index: 1, kind: input, shape index: {}]
  %s2 = inlined_call_operand.vmem [shape: f32[16,1], index: 2, kind: input, shape index: {}]
  %s3 = inlined_call_operand.hbm [shape: f32[16,8192], index: 3, kind: output, shape index: {}]
  %s4 = sld [smem:[#allocation0]]
  $region49: #{tpu_custom_call.1} parent=0
    _
  %s6 = ssub.s32 1, %s4
  %s7 = scalar_select 0, %s6, %s4
  $region1: #{tpu_custom_call.1} parent=0
    #allocation2 [shape = 'u8[65536]{0}', space=vmem, size = 0x10000, scoped, tag = 'input window, operand 1']
    #allocation3 [shape = 's32[2]{0}', space=sflag, size = 0x8, scoped, tag = 'scoped memory for tpu_custom_call.1']
    #allocation4 [shape = 's32[2]{0}', space=sflag, size = 0x8, scoped, tag = 'scoped memory for tpu_custom_call.1']
    #allocation5 [shape = 'u8[65536]{0}', space=vmem, size = 0x10000, scoped, tag = 'output window, operand 0']
    %8 = vsyncpa [#allocation3], 0
    %s9 = scalar_lea.sflag [#allocation3], 1
    %10 = vsyncpa %s9, 0
    %11 = vsyncpa [#allocation4], 0
    %s12 = scalar_lea.sflag [#allocation4], 1
    %13 = vsyncpa %s12, 0
    loop: start=0, step=1, limit=18
    $region2: #{tpu_custom_call.1} parent=1 // loop_pre_header
      _
    $region3: #{tpu_custom_call.1} parent=1 // loop_header
      %s15 = sphi 0, %s19
      %p16 = scmp.ge.s32.totalorder %s15, 18
      %s23 = sphi 0, %s23
      %s25 = sphi 0, %s23
      %s26 = sphi 0, %s25
      %s40 = sphi 0, %s26
      %s46 = sphi 0, %s48
      %s49 = sphi 0, %s46
      %s50 = sphi 0, %s49
      %s66 = sphi 0, %s50
      %s70 = sphi 0, %s70
      %s72 = sphi 0, %s70
      %s73 = sphi 0, %s72
      %s87 = sphi 0, %s73
      %s93 = sphi 0, %s95
      %s96 = sphi 0, %s93
      %s97 = sphi 0, %s96
      %s113 = sphi 0, %s97
    $region4: #{tpu_custom_call.1} parent=1 // loop_header_branch
      %18 = sbr.rel (%p16) target = $region8
    $region5: #{tpu_custom_call.1} parent=1 // loop_body
      %s20 = ssub.s32 %s15, 1
      %s21 = ssub.s32 %s15, 2
      %s22 = sadd.s32 %s15, 1
      %s24 = sadd.s32 %s23, 1
      %p27 = scmp.eq.s32.totalorder %s15, 15
      %p28 = scmp.ne.s32.totalorder %s23, %s25
      %p29 = scmp.eq.s32.totalorder %s15, 0
      %p30 = por %p28, %p29
      %p31 = scmp.ne.s32.totalorder %s23, %s25
      %p32 = scmp.eq.s32.totalorder %s20, 15
      %p33 = por %p31, %p32
      %p34 = scmp.ne.s32.totalorder %s25, %s26
      %p35 = scmp.eq.s32.totalorder %s20, 0
      %p36 = por %p34, %p35
      %p37 = scmp.ne.s32.totalorder %s25, %s26
      %p38 = scmp.eq.s32.totalorder %s21, 15
      %p39 = por %p37, %p38
      %p41 = scmp.ne.s32.totalorder %s26, %s40
      %p42 = scmp.eq.s32.totalorder %s21, 0
      %p43 = por %p41, %p42
      %s44 = ssub.s32 %s15, %s22
      %p45 = scmp.eq.s32.totalorder %s44, 0
      %s47 = sadd.s32 %s46, 1
      %s48 = scalar_select %p45, %s46, %s47
      %p51 = pneg %p45
      %p52 = scmp.eq.s32.totalorder %s15, 15
      %p53 = por %p51, %p52
      %p54 = scmp.ne.s32.totalorder %s46, %s49
      %p55 = scmp.eq.s32.totalorder %s15, 0
      %p56 = por %p54, %p55
      %p57 = scmp.ne.s32.totalorder %s46, %s49
      %p58 = scmp.eq.s32.totalorder %s20, 15
      %p59 = por %p57, %p58
      %p60 = scmp.ne.s32.totalorder %s49, %s50
      %p61 = scmp.eq.s32.totalorder %s20, 0
      %p62 = por %p60, %p61
      %p63 = scmp.ne.s32.totalorder %s49, %s50
      %p64 = scmp.eq.s32.totalorder %s21, 15
      %p65 = por %p63, %p64
      %p67 = scmp.ne.s32.totalorder %s50, %s66
      %p68 = scmp.eq.s32.totalorder %s21, 0
      %p69 = por %p67, %p68
      %s71 = sadd.s32 %s70, 1
      %p74 = scmp.eq.s32.totalorder %s15, 15
      %p75 = scmp.ne.s32.totalorder %s70, %s72
      %p76 = scmp.eq.s32.totalorder %s15, 0
      %p77 = por %p75, %p76
      %p78 = scmp.ne.s32.totalorder %s70, %s72
      %p79 = scmp.eq.s32.totalorder %s20, 15
      %p80 = por %p78, %p79
      %p81 = scmp.ne.s32.totalorder %s72, %s73
      %p82 = scmp.eq.s32.totalorder %s20, 0
      %p83 = por %p81, %p82
      %p84 = scmp.ne.s32.totalorder %s72, %s73
      %p85 = scmp.eq.s32.totalorder %s21, 15
      %p86 = por %p84, %p85
      %p88 = scmp.ne.s32.totalorder %s73, %s87
      %p89 = scmp.eq.s32.totalorder %s21, 0
      %p90 = por %p88, %p89
      %s91 = ssub.s32 %s15, %s22
      %p92 = scmp.eq.s32.totalorder %s91, 0
      %s94 = sadd.s32 %s93, 1
      %s95 = scalar_select %p92, %s93, %s94
      %p98 = pneg %p92
      %p99 = scmp.eq.s32.totalorder %s15, 15
      %p100 = por %p98, %p99
      %p101 = scmp.ne.s32.totalorder %s93, %s96
      %p102 = scmp.eq.s32.totalorder %s15, 0
      %p103 = por %p101, %p102
      %p104 = scmp.ne.s32.totalorder %s93, %s96
      %p105 = scmp.eq.s32.totalorder %s20, 15
      %p106 = por %p104, %p105
      %p107 = scmp.ne.s32.totalorder %s96, %s97
      %p108 = scmp.eq.s32.totalorder %s20, 0
      %p109 = por %p107, %p108
      %p110 = scmp.ne.s32.totalorder %s96, %s97
      %p111 = scmp.eq.s32.totalorder %s21, 15
      %p112 = por %p110, %p111
      %p114 = scmp.ne.s32.totalorder %s97, %s113
      %p115 = scmp.eq.s32.totalorder %s21, 0
      %p116 = por %p114, %p115
      %p117 = scmp.le.s32.totalorder 1, %s15
      %p118 = scmp.lt.s32.totalorder %s15, 17
      %p119 = pnand %p117, %p118
      %p120 = pneg %p119
      // Predicated region
      $region9: #{tpu_custom_call.1} parent=5 // pred_check
        _
      $region10: #{tpu_custom_call.1} parent=5 // pred_check_branch
        %122 = sbr.rel (%p119) target = $region12
      $region11: #{tpu_custom_call.1} parent=5 // pred_region
        %s123 = ssub.s32 %s15, 1
        // Predicated region
        $region13: #{tpu_custom_call.1} parent=11 // pred_check
          %p124 = pneg %p36
        $region14: #{tpu_custom_call.1} parent=11 // pred_check_branch
          %126 = sbr.rel (%p124) target = $region16
        $region15: #{tpu_custom_call.1} parent=11 // pred_region
          _
        $region16: #{tpu_custom_call.1} parent=11 // pred_fallthru
          _
        // Predicated region
        $region17: #{tpu_custom_call.1} parent=11 // pred_check
          %p127 = pneg %p83
        $region18: #{tpu_custom_call.1} parent=11 // pred_check_branch
          %129 = sbr.rel (%p127) target = $region20
        $region19: #{tpu_custom_call.1} parent=11 // pred_region
          _
        $region20: #{tpu_custom_call.1} parent=11 // pred_fallthru
          _
      $region12: #{tpu_custom_call.1} parent=5 // pred_fallthru
        _
      %p130 = scmp.lt.s32.totalorder %s15, 16
      // Predicated region
      $region21: #{tpu_custom_call.1} parent=5 // pred_check
        %p131 = pneg %p130
      $region22: #{tpu_custom_call.1} parent=5 // pred_check_branch
        %133 = sbr.rel (%p131) target = $region24
      $region23: #{tpu_custom_call.1} parent=5 // pred_region
        // Predicated region
        $region25: #{tpu_custom_call.1} parent=23 // pred_check
          %p134 = pneg %p56
        $region26: #{tpu_custom_call.1} parent=23 // pred_check_branch
          %136 = sbr.rel (%p134) target = $region28
        $region27: #{tpu_custom_call.1} parent=23 // pred_region
          %s137 = sand.u32 %s46, 1
          %s138 = scalar_lea.sflag [#allocation3], %s137
          %s139 = sand.u32 %s46, 1
          %s140 = smul.addr %s139, 64
          %s141 = scalar_lea.vmem [#allocation2], %s140
          %s142 = smul.u32 4, %s15
          %144 = vsyncadd %s138, 0
          %s145 = smul.addr %s142, 4
          %s146 = scalar_lea.hbm %s1, %s145
          %s147 = sshll.u32 %s146, 4
          %s148 = int_to_ptr.hbm [resolvable:$true] %s147
          %s149 = sshll.u32 %s141, 4
          %s150 = int_to_ptr.vmem [resolvable:$true] %s149
          %155 = dma.hbm_to_vmem [thread:$0]  %s148, 1024, %s150, %s138, 4096, 256, 16
        $region28: #{tpu_custom_call.1} parent=23 // pred_fallthru
          _
      $region24: #{tpu_custom_call.1} parent=5 // pred_fallthru
        _
      %p156 = scmp.le.s32.totalorder 1, %s15
      %p157 = scmp.lt.s32.totalorder %s15, 17
      %p158 = pnand %p156, %p157
      %p159 = pneg %p158
      // Predicated region
      $region29: #{tpu_custom_call.1} parent=5 // pred_check
        _
      $region30: #{tpu_custom_call.1} parent=5 // pred_check_branch
        %161 = sbr.rel (%p158) target = $region32
      $region31: #{tpu_custom_call.1} parent=5 // pred_region
        %s162 = ssub.s32 %s15, 1
        %s163 = sand.u32 %s49, 1
        %s164 = scalar_lea.sflag [#allocation3], %s163
        %s165 = sand.u32 %s49, 1
        %s166 = smul.addr %s165, 64
        %s167 = scalar_lea.vmem [#allocation2], %s166
        // Predicated region
        $region33: #{tpu_custom_call.1} parent=31 // pred_check
          %p168 = pneg %p62
        $region34: #{tpu_custom_call.1} parent=31 // pred_check_branch
          %170 = sbr.rel (%p168) target = $region36
        $region35: #{tpu_custom_call.1} parent=31 // pred_region
          %172 = dma.done %s164, 1024
        $region36: #{tpu_custom_call.1} parent=31 // pred_fallthru
          _
        %p173 = pneg %p36
        %p174 = pneg %p33
        %s175 = sand.u32 %s49, 1
        %s176 = scalar_lea.sflag [#allocation3], %s175
        %s177 = sand.u32 %s49, 1
        %s178 = smul.addr %s177, 64
        %s179 = scalar_lea.vmem [#allocation2], %s178
        %p180 = pneg %p62
        %p181 = pneg %p59
        %p182 = pneg %p83
        %p183 = pneg %p80
        %p184 = pneg %p109
        %p185 = pneg %p106
        %s186 = sand.u32 %s96, 1
        %s187 = scalar_lea.sflag [#allocation4], %s186
        %s188 = sand.u32 %s96, 1
        %s189 = smul.addr %s188, 64
        %s190 = scalar_lea.vmem [#allocation5], %s189
        %s191 = smul.u32 4, %s20
        %s192 = smul.u32 4, %s20
        %v194 = vld [vmem:[%s0] sm:$0xf]
        %v195 = vld [vmem:[%s0 + $0x4] sm:$0xf]
        %v196 = vld [vmem:[%s167] sm:$0xff]
        %v197 = vld [vmem:[%s167 + $0x8] sm:$0xff]
        %v198 = vld [vmem:[%s167 + $0x10] sm:$0xff]
        %v199 = vld [vmem:[%s167 + $0x18] sm:$0xff]
        %v200 = vld [vmem:[%s167 + $0x20] sm:$0xff]
        %v201 = vld [vmem:[%s167 + $0x28] sm:$0xff]
        %v202 = vld [vmem:[%s167 + $0x30] sm:$0x33]
        %v203 = vld [vmem:[%s167 + $0x38] sm:$0x33]
        %v204 = vld [vmem:[%s2] sm:$0xff]
        %v205 = vld [vmem:[%s2 + $0x8] sm:$0xff]
        %207 = vset.pattern.permute.xlu0 0
        %208 = vperm.xlu0 %207, %v204
        %v209 = vpop.permute.xlu0 %208
        %212 = vset.pattern.permute.xlu0 0
        %213 = vperm.xlu0 %212, %v205
        %v214 = vpop.permute.xlu0 %213
        %v218 = vunpack.c.l.b16 %v194
        %v219 = vunpack.c.l.b16 %v195
        %v220 = vpack.c.b16 %v219, %v218
        %v229 = vunpack.c.l.b16 %v196
        %v230 = vunpack.c.h.b16 %v196
        %v231 = vunpack.c.l.b16 %v197
        %v232 = vunpack.c.h.b16 %v197
        %v233 = vunpack.c.l.b16 %v198
        %v234 = vunpack.c.h.b16 %v198
        %v235 = vunpack.c.l.b16 %v199
        %v236 = vunpack.c.h.b16 %v199
        %v237 = vunpack.c.l.b16 %v200
        %v238 = vunpack.c.h.b16 %v200
        %v239 = vunpack.c.l.b16 %v201
        %v240 = vunpack.c.h.b16 %v201
        %v241 = vunpack.c.l.b16 %v202
        %v242 = vunpack.c.h.b16 %v202
        %v243 = vunpack.c.l.b16 %v203
        %v244 = vunpack.c.h.b16 %v203
        %v245 = vpack.c.b16 %v233, %v229
        %v246 = vpack.c.b16 %v234, %v230
        %v247 = vpack.c.b16 %v235, %v231
        %v248 = vpack.c.b16 %v236, %v232
        %v249 = vpack.c.b16 %v241, %v237
        %v250 = vpack.c.b16 %v242, %v238
        %v251 = vpack.c.b16 %v243, %v239
        %v252 = vpack.c.b16 %v244, %v240
        %vm257 = vcmask 220160
        %v259 = vsel %vm257, %v220, 0
        %vm261 = vcmask 1044480
        %vm262 = vcmask 1045504
        %v263 = vsel %vm261, 4294967295, 65535
        %v264 = vsel %vm262, %v263, 0
        %v266 = vand.u32 %v249, %v264
        %v269 = vand.u32 %v250, %v264
        %v272 = vand.u32 %v251, %v264
        %v275 = vand.u32 %v252, %v264
        %277 = vmatpush.bf16.msra.mxu0 0
        %278 = vmatpush.bf16.msra.mxu0 0
        %279 = vmatpush.bf16.msra.mxu0 0
        %280 = vmatpush.bf16.msra.mxu0 0
        %281 = vmatpush.bf16.msra.mxu0 0
        %282 = vmatpush.bf16.msra.mxu0 0
        %283 = vmatpush.bf16.msra.mxu0 %v266
        %284 = vmatpush.bf16.msra.mxu0 %v245
        %285 = vmatmul.bf16.gmra.mxu0 %v259
        %v286 = vpop.f32.mrf.mxu0
        %v287 = vadd.f32 %v209, %v286
        %v288 = vpop.f32.mrf.mxu0
        %v289 = vadd.f32 %v214, %v288
        %290 = vdwg.mxu0
        %291 = vmatpush.bf16.msra.mxu0 0
        %292 = vmatpush.bf16.msra.mxu0 0
        %293 = vmatpush.bf16.msra.mxu0 0
        %294 = vmatpush.bf16.msra.mxu0 0
        %295 = vmatpush.bf16.msra.mxu0 0
        %296 = vmatpush.bf16.msra.mxu0 0
        %297 = vmatpush.bf16.msra.mxu0 %v269
        %298 = vmatpush.bf16.msra.mxu0 %v246
        %299 = vmatmul.bf16.gmra.mxu0 %v259
        %v300 = vpop.f32.mrf.mxu0
        %v301 = vadd.f32 %v209, %v300
        %v302 = vpop.f32.mrf.mxu0
        %v303 = vadd.f32 %v214, %v302
        %304 = vdwg.mxu0
        %305 = vmatpush.bf16.msra.mxu0 0
        %306 = vmatpush.bf16.msra.mxu0 0
        %307 = vmatpush.bf16.msra.mxu0 0
        %308 = vmatpush.bf16.msra.mxu0 0
        %309 = vmatpush.bf16.msra.mxu0 0
        %310 = vmatpush.bf16.msra.mxu0 0
        %311 = vmatpush.bf16.msra.mxu0 %v272
        %312 = vmatpush.bf16.msra.mxu0 %v247
        %313 = vmatmul.bf16.gmra.mxu0 %v259
        %v314 = vpop.f32.mrf.mxu0
        %v315 = vadd.f32 %v209, %v314
        %v316 = vpop.f32.mrf.mxu0
        %v317 = vadd.f32 %v214, %v316
        %318 = vdwg.mxu0
        %319 = vmatpush.bf16.msra.mxu0 0
        %320 = vmatpush.bf16.msra.mxu0 0
        %321 = vmatpush.bf16.msra.mxu0 0
        %322 = vmatpush.bf16.msra.mxu0 0
        %323 = vmatpush.bf16.msra.mxu0 0
        %324 = vmatpush.bf16.msra.mxu0 0
        %325 = vmatpush.bf16.msra.mxu0 %v275
        %326 = vmatpush.bf16.msra.mxu0 %v248
        %327 = vmatmul.bf16.gmra.mxu0 %v259
        %v328 = vpop.f32.mrf.mxu0
        %v329 = vadd.f32 %v209, %v328
        %v330 = vpop.f32.mrf.mxu0
        %v331 = vadd.f32 %v214, %v330
        %332 = vdwg.mxu0
        %v333 = vmax.f32 %v287, 0.0
        %v334 = vmax.f32 %v301, 0.0
        %v335 = vmax.f32 %v315, 0.0
        %v336 = vmax.f32 %v329, 0.0
        %v337 = vmax.f32 %v289, 0.0
        %v338 = vmax.f32 %v303, 0.0
        %v339 = vmax.f32 %v317, 0.0
        %v340 = vmax.f32 %v331, 0.0
        %341 = vst [vmem:[%s190] sm:$0xff] %v333
        %342 = vst [vmem:[%s190 + $0x8] sm:$0xff] %v334
        %343 = vst [vmem:[%s190 + $0x10] sm:$0xff] %v335
        %344 = vst [vmem:[%s190 + $0x18] sm:$0xff] %v336
        %345 = vst [vmem:[%s190 + $0x20] sm:$0xff] %v337
        %346 = vst [vmem:[%s190 + $0x28] sm:$0xff] %v338
        %347 = vst [vmem:[%s190 + $0x30] sm:$0xff] %v339
        %348 = vst [vmem:[%s190 + $0x38] sm:$0xff] %v340
        %s349 = sand.u32 %s96, 1
        %s350 = scalar_lea.sflag [#allocation4], %s349
        %s351 = sand.u32 %s96, 1
        %s352 = smul.addr %s351, 64
        %s353 = scalar_lea.vmem [#allocation5], %s352
        // Predicated region
        $region37: #{tpu_custom_call.1} parent=31 // pred_check
          %p354 = pneg %p106
        $region38: #{tpu_custom_call.1} parent=31 // pred_check_branch
          %356 = sbr.rel (%p354) target = $region40
        $region39: #{tpu_custom_call.1} parent=31 // pred_region
          %s357 = smul.u32 4, %s20
          %359 = vsyncadd %s350, 0
          %s360 = smul.addr %s357, 8
          %s361 = scalar_lea.hbm %s3, %s360
          %s362 = sshll.u32 %s353, 4
          %s363 = int_to_ptr.vmem [resolvable:$true] %s362
          %s364 = sshll.u32 %s361, 4
          %s365 = int_to_ptr.hbm [resolvable:$true] %s364
          %370 = dma.vmem_to_hbm [thread:$0]  %s363, 1024, %s365, %s350, 512, 8192, 32
        $region40: #{tpu_custom_call.1} parent=31 // pred_fallthru
          _
      $region32: #{tpu_custom_call.1} parent=5 // pred_fallthru
        _
      %p371 = scmp.le.s32.totalorder 2, %s15
      // Predicated region
      $region41: #{tpu_custom_call.1} parent=5 // pred_check
        %p372 = pneg %p371
      $region42: #{tpu_custom_call.1} parent=5 // pred_check_branch
        %374 = sbr.rel (%p372) target = $region44
      $region43: #{tpu_custom_call.1} parent=5 // pred_region
        %s375 = ssub.s32 %s15, 2
        // Predicated region
        $region45: #{tpu_custom_call.1} parent=43 // pred_check
          %p376 = pneg %p112
        $region46: #{tpu_custom_call.1} parent=43 // pred_check_branch
          %378 = sbr.rel (%p376) target = $region48
        $region47: #{tpu_custom_call.1} parent=43 // pred_region
          %s379 = sand.u32 %s97, 1
          %s380 = scalar_lea.sflag [#allocation4], %s379
          %s381 = sand.u32 %s97, 1
          %s382 = smul.addr %s381, 64
          %s383 = scalar_lea.vmem [#allocation5], %s382
          %385 = dma.done %s380, 1024
        $region48: #{tpu_custom_call.1} parent=43 // pred_fallthru
          _
      $region44: #{tpu_custom_call.1} parent=5 // pred_fallthru
        _
    $region6: #{tpu_custom_call.1} parent=1 // loop_footer
      %s19 = sadd.s32 1, %s15
    $region7: #{tpu_custom_call.1} parent=1 // loop_footer_branch
      %14 = sbr.rel target = $region3
    $region8: #{tpu_custom_call.1} parent=1 // loop_exit
      _
    %386 = vsyncpa [#allocation3], 1
    %s387 = scalar_lea.sflag [#allocation3], 1
    %388 = vsyncpa %s387, 1
    %389 = vsyncpa [#allocation4], 1
    %s390 = scalar_lea.sflag [#allocation4], 1
    %391 = vsyncpa %s390, 1

</llo_original>
